<compile_context>
chip_gen: v7x
topology: tpu7x:2x2x1
jax: 0.10.0
libtpu: 0.0.40
codegen_flags: <defaults>
</compile_context>

<pallas_src>
import functools

import jax
import jax.numpy as jnp
from jax.experimental import pallas as pl
from jax.experimental.pallas import tpu as pltpu

IN_F = 14
HID = 100
OUT_F = 1

# Default batch tile (lanes). Clamped to the (128-rounded) batch for small B.
DEFAULT_TILE_B = 8192


def _round_up(x, m):
    return ((x + m - 1) // m) * m


def _mlp_kernel(xt_ref, w1t_ref, b1_ref, w2_ref, b2_ref, o_ref):
    # xt_ref : (IN_F, TILE_B)   feature-major input tile (batch on lanes)
    # w1t_ref: (HID, IN_F)      = W1^T, VMEM-resident across the whole grid
    # b1_ref : (HID, 1), w2_ref: (HID, 1), b2_ref: (1, 1)
    # o_ref  : (1, TILE_B)      lane-dense output tile
    # fc1 on the MXU, f32 accumulate: (HID, IN_F) @ (IN_F, TILE_B) -> (HID, TILE_B)
    h = jnp.dot(w1t_ref[...], xt_ref[...], preferred_element_type=jnp.float32)
    # bias + ReLU on the VPU (b1 broadcasts along lanes)
    h = jnp.maximum(h + b1_ref[...], 0.0)
    # fc2 as VPU mul + sublane reduce (avoids a 1-wide MXU matmul)
    y = jnp.sum(h * w2_ref[...], axis=0, keepdims=True) + b2_ref[...]  # (1, TILE_B)
    o_ref[...] = y.astype(o_ref.dtype)


@functools.partial(jax.jit, static_argnames=("tile_b",))
def regression_nn_forward(x, w1, b1, w2, b2, *, tile_b=DEFAULT_TILE_B):
    """x: (B, 14) f32; w1: (14, 100); b1: (100,); w2: (100, 1); b2: (1,).

    Returns (B, 1) f32, matching PyTorch RegressionNN.forward.
    """
    B = x.shape[0]
    # Keep lane dim a multiple of 128; shrink the tile for small batches.
    tile_b = min(tile_b, _round_up(B, 128))
    B_pad = _round_up(B, tile_b)

    # Feature-major layout: batch maps to the lane axis end-to-end.
    x_t = x.T.astype(jnp.float32)                      # (IN_F, B)
    if B_pad != B:
        x_t = jnp.pad(x_t, ((0, 0), (0, B_pad - B)))   # (IN_F, B_pad)

    w1_t = w1.T                                        # (HID, IN_F)
    b1_c = b1.reshape(HID, 1)
    w2_c = w2.reshape(HID, OUT_F)                      # (HID, 1)
    b2_c = b2.reshape(1, OUT_F)                        # (1, 1)

    grid = (B_pad // tile_b,)

    y_t = pl.pallas_call(
        _mlp_kernel,
        out_shape=jax.ShapeDtypeStruct((1, B_pad), jnp.float32),
        grid=grid,
        in_specs=[
            # batch tiles stream through, double-buffered
            pl.BlockSpec((IN_F, tile_b), lambda i: (0, i)),
            # weights / biases: constant index_map -> fetched once, VMEM-resident
            pl.BlockSpec((HID, IN_F), lambda i: (0, 0)),
            pl.BlockSpec((HID, 1), lambda i: (0, 0)),
            pl.BlockSpec((HID, 1), lambda i: (0, 0)),
            pl.BlockSpec((1, 1), lambda i: (0, 0)),
        ],
        out_specs=pl.BlockSpec((1, tile_b), lambda i: (0, i)),
        compiler_params=pltpu.CompilerParams(
            dimension_semantics=("parallel",),          # shards across TCs on v7x
            vmem_limit_bytes=48 * 1024 * 1024,          # headroom for large tiles
        ),
    )(x_t, w1_t, b1_c, w2_c, b2_c)

    # Back to the module's (B, 1) layout (cheap wrapper-side reshape/slice).
    return y_t[0, :B].reshape(B, OUT_F)


def init_params(key):
    """Deterministic init mimicking PyTorch Linear default (uniform +/- 1/sqrt(fan_in))."""
    k1, k2, k3, k4 = jax.random.split(key, 4)
    lim1 = 1.0 / jnp.sqrt(jnp.float32(IN_F))
    lim2 = 1.0 / jnp.sqrt(jnp.float32(HID))
    w1 = jax.random.uniform(k1, (IN_F, HID), jnp.float32, -lim1, lim1)
    b1 = jax.random.uniform(k2, (HID,), jnp.float32, -lim1, lim1)
    w2 = jax.random.uniform(k3, (HID, OUT_F), jnp.float32, -lim2, lim2)
    b2 = jax.random.uniform(k4, (OUT_F,), jnp.float32, -lim2, lim2)
    return w1, b1, w2, b2


if __name__ == "__main__":
    key = jax.random.PRNGKey(0)
    kx, kp = jax.random.split(key)
    B = 8
    x = jax.random.normal(kx, (B, IN_F), jnp.float32)
    w1, b1, w2, b2 = init_params(kp)

    out = regression_nn_forward(x, w1, b1, w2, b2)
    out = jax.block_until_ready(out)

    # reference check in plain JAX
    ref = jnp.maximum(x @ w1 + b1, 0.0) @ w2 + b2
    assert out.shape == (B, OUT_F)
    assert jnp.allclose(out, ref, atol=1e-5, rtol=1e-5)

    # also exercise a multi-tile, non-multiple-of-tile batch
    B2 = 300
    x2 = jax.random.normal(kx, (B2, IN_F), jnp.float32)
    out2 = jax.block_until_ready(
        regression_nn_forward(x2, w1, b1, w2, b2, tile_b=128))
    ref2 = jnp.maximum(x2 @ w1 + b1, 0.0) @ w2 + b2
    assert out2.shape == (B2, OUT_F)
    assert jnp.allclose(out2, ref2, atol=1e-5, rtol=1e-5)

    print("KERNEL_OK")
</pallas_src>

<mosaic_0001>
module attributes {stable_mosaic.version = 11 : i64} {
  func.func @_mlp_kernel(%arg0: i32, %arg1: memref<14x128xf32, #tpu.memory_space<vmem>>, %arg2: memref<100x14xf32, #tpu.memory_space<vmem>>, %arg3: memref<100x1xf32, #tpu.memory_space<vmem>>, %arg4: memref<100x1xf32, #tpu.memory_space<vmem>>, %arg5: memref<1x1xf32, #tpu.memory_space<vmem>>, %arg6: memref<1x128xf32, #tpu.memory_space<vmem>>) attributes {dimension_semantics = [#tpu.dimension_semantics<parallel>], iteration_bounds = array<i64: 1>, scalar_prefetch = 0 : i64, scratch_operands = 0 : i64, tpu.core_type = #tpu.core_type<tc>, window_params = [{transform_indices = @transform_0, window_bounds = array<i64: 14, 128>}, {pipeline_mode = #tpu.pipeline_mode<synchronous>, transform_indices = @transform_1, window_bounds = array<i64: 100, 14>}, {pipeline_mode = #tpu.pipeline_mode<synchronous>, transform_indices = @transform_2, window_bounds = array<i64: 100, 1>}, {pipeline_mode = #tpu.pipeline_mode<synchronous>, transform_indices = @transform_3, window_bounds = array<i64: 100, 1>}, {pipeline_mode = #tpu.pipeline_mode<synchronous>, transform_indices = @transform_4, window_bounds = array<i64: 1, 1>}, {transform_indices = @transform_5, window_bounds = array<i64: 1, 128>}]} {
    %c0 = arith.constant 0 : index
    %c0_0 = arith.constant 0 : index
    %0 = vector.load %arg2[%c0, %c0_0] : memref<100x14xf32, #tpu.memory_space<vmem>>, vector<100x14xf32>
    %c0_1 = arith.constant 0 : index
    %c0_2 = arith.constant 0 : index
    %1 = vector.load %arg1[%c0_1, %c0_2] : memref<14x128xf32, #tpu.memory_space<vmem>>, vector<14x128xf32>
    %cst = arith.constant dense<0.000000e+00> : vector<100x128xf32>
    %2 = tpu.matmul %0, %1, %cst {dimension_numbers = #tpu.dot_dimension_numbers<[1], [0], [0], [1], [0, 0, 1, 1], [], []>} : vector<100x14xf32>, vector<14x128xf32>, vector<100x128xf32> -> vector<100x128xf32>
    %c0_3 = arith.constant 0 : index
    %c0_4 = arith.constant 0 : index
    %3 = vector.load %arg3[%c0_3, %c0_4] : memref<100x1xf32, #tpu.memory_space<vmem>>, vector<100x1xf32>
    %4 = vector.broadcast %3 : vector<100x1xf32> to vector<100x128xf32>
    %5 = arith.addf %2, %4 : vector<100x128xf32>
    %cst_5 = arith.constant 0.000000e+00 : f32
    %6 = vector.broadcast %cst_5 : f32 to vector<100x128xf32>
    %7 = arith.maximumf %5, %6 : vector<100x128xf32>
    %c0_6 = arith.constant 0 : index
    %c0_7 = arith.constant 0 : index
    %8 = vector.load %arg4[%c0_6, %c0_7] : memref<100x1xf32, #tpu.memory_space<vmem>>, vector<100x1xf32>
    %9 = vector.broadcast %8 : vector<100x1xf32> to vector<100x128xf32>
    %10 = arith.mulf %7, %9 : vector<100x128xf32>
    %cst_8 = arith.constant dense<0.000000e+00> : vector<128xf32>
    %11 = vector.multi_reduction <add>, %10, %cst_8 [0] : vector<100x128xf32> to vector<128xf32>
    %12 = vector.shape_cast %11 : vector<128xf32> to vector<1x128xf32>
    %c0_9 = arith.constant 0 : index
    %c0_10 = arith.constant 0 : index
    %13 = vector.load %arg5[%c0_9, %c0_10] : memref<1x1xf32, #tpu.memory_space<vmem>>, vector<1x1xf32>
    %14 = vector.broadcast %13 : vector<1x1xf32> to vector<1x128xf32>
    %15 = arith.addf %12, %14 : vector<1x128xf32>
    %c0_11 = arith.constant 0 : index
    %c0_12 = arith.constant 0 : index
    %16 = vector.load %arg6[%c0_11, %c0_12] : memref<1x128xf32, #tpu.memory_space<vmem>>, vector<1x128xf32>
    tpu.vector_store %arg6[%c0_11, %c0_12], %15 {strides = array<i32>} : memref<1x128xf32, #tpu.memory_space<vmem>>, vector<1x128xf32>,
    return
  }
  func.func @transform_0(%arg0: i32) -> (i32, i32) {
    %c0_i32 = arith.constant 0 : i32
    %c0_i32_0 = arith.constant 0 : i32
    return %c0_i32, %arg0 : i32, i32
  }
  func.func @transform_1(%arg0: i32) -> (i32, i32) {
    %c0_i32 = arith.constant 0 : i32
    %c0_i32_0 = arith.constant 0 : i32
    %c0_i32_1 = arith.constant 0 : i32
    return %c0_i32, %c0_i32_0 : i32, i32
  }
  func.func @transform_2(%arg0: i32) -> (i32, i32) {
    %c0_i32 = arith.constant 0 : i32
    %c0_i32_0 = arith.constant 0 : i32
    %c0_i32_1 = arith.constant 0 : i32
    return %c0_i32, %c0_i32_0 : i32, i32
  }
  func.func @transform_3(%arg0: i32) -> (i32, i32) {
    %c0_i32 = arith.constant 0 : i32
    %c0_i32_0 = arith.constant 0 : i32
    %c0_i32_1 = arith.constant 0 : i32
    return %c0_i32, %c0_i32_0 : i32, i32
  }
  func.func @transform_4(%arg0: i32) -> (i32, i32) {
    %c0_i32 = arith.constant 0 : i32
    %c0_i32_0 = arith.constant 0 : i32
    %c0_i32_1 = arith.constant 0 : i32
    return %c0_i32, %c0_i32_0 : i32, i32
  }
  func.func @transform_5(%arg0: i32) -> (i32, i32) {
    %c0_i32 = arith.constant 0 : i32
    %c0_i32_0 = arith.constant 0 : i32
    return %c0_i32, %arg0 : i32, i32
  }
}

</mosaic_0001>

<llo_original>
// kernel: regression_nn_forward.1
$region0: #{regression_nn_forward.1}
  #allocation0 [shape = 'u32[]', space=smem, size = 0x4, offset = 0x4, fixed_abs, tag = 'smem constant byte address 0x4 - core index']
  #allocation1 [shape = 'u32[144,128]{1,0:T(1,128)}', space=vmem, size = 0x12000, scoped, tag = 'internal scratch']
  #allocation2 [shape = 'f32[1,1]{1,0:T(1,128)S(1)}', space=vmem, size = 0x200, scoped, tag = 'scoped memory for regression_nn_forward.1']
  %s0 = inlined_call_operand.vmem [shape: f32[14,128], index: 0, kind: input, shape index: {}]
  %s1 = inlined_call_operand.vmem [shape: f32[100,14], index: 1, kind: input, shape index: {}]
  %s2 = inlined_call_operand.vmem [shape: f32[100,1], index: 2, kind: input, shape index: {}]
  %s3 = inlined_call_operand.vmem [shape: f32[100,1], index: 3, kind: input, shape index: {}]
  %s4 = inlined_call_operand.<no memory space> [shape: f32[1,1], index: 4, kind: input, shape index: {}]
  %s5 = inlined_call_operand.vmem [shape: f32[1,128], index: 5, kind: output, shape index: {}]
  %s6 = sld [smem:[#allocation0]]
  $region30: #{regression_nn_forward.1} parent=0
    _
  %s8 = ssub.s32 1, %s6
  %s9 = scalar_select 0, %s8, %s6
  %v10 = vstv %s4
  %11 = vst [vmem:[#allocation2] sm:$0x1] %v10
  // Predicated region
  $region2: #{regression_nn_forward.1} parent=0 // pred_check
    _
  $region3: #{regression_nn_forward.1} parent=0 // pred_check_branch
    %13 = sbr.rel (0) target = $region5
  $region4: #{regression_nn_forward.1} parent=0 // pred_region
    _
  $region5: #{regression_nn_forward.1} parent=0 // pred_fallthru
    _
  // Predicated region
  $region6: #{regression_nn_forward.1} parent=0 // pred_check
    _
  $region7: #{regression_nn_forward.1} parent=0 // pred_check_branch
    %15 = sbr.rel (0) target = $region9
  $region8: #{regression_nn_forward.1} parent=0 // pred_region
    _
  $region9: #{regression_nn_forward.1} parent=0 // pred_fallthru
    _
  // Predicated region
  $region10: #{regression_nn_forward.1} parent=0 // pred_check
    _
  $region11: #{regression_nn_forward.1} parent=0 // pred_check_branch
    %17 = sbr.rel (0) target = $region13
  $region12: #{regression_nn_forward.1} parent=0 // pred_region
    _
  $region13: #{regression_nn_forward.1} parent=0 // pred_fallthru
    _
  // Predicated region
  $region14: #{regression_nn_forward.1} parent=0 // pred_check
    _
  $region15: #{regression_nn_forward.1} parent=0 // pred_check_branch
    %19 = sbr.rel (0) target = $region17
  $region16: #{regression_nn_forward.1} parent=0 // pred_region
    _
  $region17: #{regression_nn_forward.1} parent=0 // pred_fallthru
    _
  // Predicated region
  $region18: #{regression_nn_forward.1} parent=0 // pred_check
    _
  $region19: #{regression_nn_forward.1} parent=0 // pred_check_branch
    %21 = sbr.rel (0) target = $region21
  $region20: #{regression_nn_forward.1} parent=0 // pred_region
    _
  $region21: #{regression_nn_forward.1} parent=0 // pred_fallthru
    _
  %v22 = vld [vmem:[%s1] sm:$0xff]
  %v23 = vld [vmem:[%s1 + $0x8] sm:$0xff]
  %v24 = vld [vmem:[%s1 + $0x10] sm:$0xff]
  %v25 = vld [vmem:[%s1 + $0x18] sm:$0xff]
  %v26 = vld [vmem:[%s1 + $0x20] sm:$0xff]
  %v27 = vld [vmem:[%s1 + $0x28] sm:$0xff]
  %v28 = vld [vmem:[%s1 + $0x30] sm:$0xff]
  %v29 = vld [vmem:[%s1 + $0x38] sm:$0xff]
  %v30 = vld [vmem:[%s1 + $0x40] sm:$0xff]
  %v31 = vld [vmem:[%s1 + $0x48] sm:$0xff]
  %v32 = vld [vmem:[%s1 + $0x50] sm:$0xff]
  %v33 = vld [vmem:[%s1 + $0x58] sm:$0xff]
  %v34 = vld [vmem:[%s1 + $0x60] sm:$0xf]
  %v35 = vld [vmem:[%s0] sm:$0xff]
  %v36 = vld [vmem:[%s0 + $0x8] sm:$0x3f]
  %v37 = vld [vmem:[%s2] sm:$0xff]
  %v38 = vld [vmem:[%s2 + $0x8] sm:$0xff]
  %v39 = vld [vmem:[%s2 + $0x10] sm:$0xff]
  %v40 = vld [vmem:[%s2 + $0x18] sm:$0xff]
  %v41 = vld [vmem:[%s2 + $0x20] sm:$0xff]
  %v42 = vld [vmem:[%s2 + $0x28] sm:$0xff]
  %v43 = vld [vmem:[%s2 + $0x30] sm:$0xff]
  %v44 = vld [vmem:[%s2 + $0x38] sm:$0xff]
  %v45 = vld [vmem:[%s2 + $0x40] sm:$0xff]
  %v46 = vld [vmem:[%s2 + $0x48] sm:$0xff]
  %v47 = vld [vmem:[%s2 + $0x50] sm:$0xff]
  %v48 = vld [vmem:[%s2 + $0x58] sm:$0xff]
  %v49 = vld [vmem:[%s2 + $0x60] sm:$0xf]
  %51 = vset.pattern.permute.xlu0 0
  %52 = vperm.xlu0 %51, %v37
  %v53 = vpop.permute.xlu0 %52
  %56 = vset.pattern.permute.xlu0 0
  %57 = vperm.xlu0 %56, %v38
  %v58 = vpop.permute.xlu0 %57
  %61 = vset.pattern.permute.xlu0 0
  %62 = vperm.xlu0 %61, %v39
  %v63 = vpop.permute.xlu0 %62
  %66 = vset.pattern.permute.xlu0 0
  %67 = vperm.xlu0 %66, %v40
  %v68 = vpop.permute.xlu0 %67
  %71 = vset.pattern.permute.xlu0 0
  %72 = vperm.xlu0 %71, %v41
  %v73 = vpop.permute.xlu0 %72
  %76 = vset.pattern.permute.xlu0 0
  %77 = vperm.xlu0 %76, %v42
  %v78 = vpop.permute.xlu0 %77
  %81 = vset.pattern.permute.xlu0 0
  %82 = vperm.xlu0 %81, %v43
  %v83 = vpop.permute.xlu0 %82
  %86 = vset.pattern.permute.xlu0 0
  %87 = vperm.xlu0 %86, %v44
  %v88 = vpop.permute.xlu0 %87
  %91 = vset.pattern.permute.xlu0 0
  %92 = vperm.xlu0 %91, %v45
  %v93 = vpop.permute.xlu0 %92
  %96 = vset.pattern.permute.xlu0 0
  %97 = vperm.xlu0 %96, %v46
  %v98 = vpop.permute.xlu0 %97
  %101 = vset.pattern.permute.xlu0 0
  %102 = vperm.xlu0 %101, %v47
  %v103 = vpop.permute.xlu0 %102
  %106 = vset.pattern.permute.xlu0 0
  %107 = vperm.xlu0 %106, %v48
  %v108 = vpop.permute.xlu0 %107
  %111 = vset.pattern.permute.xlu0 0
  %112 = vperm.xlu0 %111, %v49
  %v113 = vpop.permute.xlu0 %112
  %vm115 = vcmask 113664
  %v117 = vsel %vm115, %v22, 0
  %v120 = vsel %vm115, %v23, 0
  %v123 = vsel %vm115, %v24, 0
  %v126 = vsel %vm115, %v25, 0
  %v129 = vsel %vm115, %v26, 0
  %v132 = vsel %vm115, %v27, 0
  %v135 = vsel %vm115, %v28, 0
  %v138 = vsel %vm115, %v29, 0
  %v141 = vsel %vm115, %v30, 0
  %v144 = vsel %vm115, %v31, 0
  %v147 = vsel %vm115, %v32, 0
  %v150 = vsel %vm115, %v33, 0
  %v153 = vsel %vm115, %v34, 0
  %vm155 = vcmask 1045504
  %v157 = vsel %vm155, %v36, 0
  %159 = vmatprep.subr.mxu0 0.0
  %160 = vmatpush1.msra.mxu0 %v35
  %161 = vmatprep.subr.mxu0 0.0
  %162 = vmatpush1.msra.mxu0 %v157
  %163 = vmatprep.subr.mxu0 0.0
  %164 = vmatpush1.msra.mxu0 0.0
  %165 = vmatprep.subr.mxu0 0.0
  %166 = vmatpush1.msra.mxu0 0.0
  %167 = vmatprep.subr.mxu0 0.0
  %168 = vmatpush1.msra.mxu0 0.0
  %169 = vmatprep.subr.mxu0 0.0
  %170 = vmatpush1.msra.mxu0 0.0
  %171 = vmatprep.subr.mxu0 0.0
  %172 = vmatpush1.msra.mxu0 0.0
  %173 = vmatprep.subr.mxu0 0.0
  %174 = vmatpush1.msra.mxu0 0.0
  %175 = vmatprep.subr.mxu0 0.0
  %176 = vmatpush1.msra.mxu0 0.0
  %177 = vmatprep.subr.mxu0 0.0
  %178 = vmatpush1.msra.mxu0 0.0
  %179 = vmatprep.subr.mxu0 0.0
  %180 = vmatpush1.msra.mxu0 0.0
  %181 = vmatprep.subr.mxu0 0.0
  %182 = vmatpush1.msra.mxu0 0.0
  %183 = vmatprep.subr.mxu0 0.0
  %184 = vmatpush1.msra.mxu0 0.0
  %185 = vmatprep.subr.mxu0 0.0
  %186 = vmatpush1.msra.mxu0 0.0
  %187 = vmatprep.subr.mxu0 0.0
  %188 = vmatpush1.msra.mxu0 0.0
  %189 = vmatprep.subr.mxu0 0.0
  %190 = vmatpush1.msra.mxu0 0.0
  %191 = vmatprep.subr.mxu0 0.0
  %192 = vmatpush1.msra.mxu0 0.0
  %193 = vmatprep.subr.mxu0 0.0
  %194 = vmatpush1.msra.mxu0 0.0
  %195 = vmatprep.subr.mxu0 0.0
  %196 = vmatpush1.msra.mxu0 0.0
  %197 = vmatprep.subr.mxu0 0.0
  %198 = vmatpush1.msra.mxu0 0.0
  %199 = vmatprep.subr.mxu0 0.0
  %200 = vmatpush1.msra.mxu0 0.0
  %201 = vmatprep.subr.mxu0 0.0
  %202 = vmatpush1.msra.mxu0 0.0
  %203 = vmatprep.subr.mxu0 0.0
  %204 = vmatpush1.msra.mxu0 0.0
  %205 = vmatprep.subr.mxu0 0.0
  %206 = vmatpush1.msra.mxu0 0.0
  %207 = vmatprep.subr.mxu0 0.0
  %208 = vmatpush1.msra.mxu0 0.0
  %209 = vmatprep.subr.mxu0 0.0
  %210 = vmatpush1.msra.mxu0 0.0
  %211 = vmatprep.subr.mxu0 0.0
  %212 = vmatpush1.msra.mxu0 0.0
  %213 = vmatprep.subr.mxu0 0.0
  %214 = vmatpush1.msra.mxu0 0.0
  %215 = vmatprep.subr.mxu0 0.0
  %216 = vmatpush1.msra.mxu0 0.0
  %217 = vmatprep.subr.mxu0 0.0
  %218 = vmatpush1.msra.mxu0 0.0
  %219 = vmatprep.subr.mxu0 0.0
  %220 = vmatpush1.msra.mxu0 0.0
  %221 = vmatprep.subr.mxu0 0.0
  %222 = vmatpush1.msra.mxu0 0.0
  %223 = vmatprep.mubr.f32.mxu0 0.0
  %224 = vmatmul.mubr.f32.gmra.mrb[0].mxu0 %v117
  %v225 = vpop.f32.mrb[0].mxu0
  %v226 = vadd.f32 %v53, %v225
  %v227 = vpop.f32.mrb[0].mxu0
  %228 = vmatprep.mubr.f32.mxu0 0.0
  %229 = vmatmul.mubr.f32.gmra.mrb[0].mxu0 %v120
  %v230 = vpop.f32.mrb[0].mxu0
  %v231 = vadd.f32 %v58, %v230
  %v232 = vpop.f32.mrb[0].mxu0
  %233 = vmatprep.mubr.f32.mxu0 0.0
  %234 = vmatmul.mubr.f32.gmra.mrb[0].mxu0 %v123
  %v235 = vpop.f32.mrb[0].mxu0
  %v236 = vadd.f32 %v63, %v235
  %v237 = vpop.f32.mrb[0].mxu0
  %238 = vmatprep.mubr.f32.mxu0 0.0
  %239 = vmatmul.mubr.f32.gmra.mrb[0].mxu0 %v126
  %v240 = vpop.f32.mrb[0].mxu0
  %v241 = vadd.f32 %v68, %v240
  %v242 = vpop.f32.mrb[0].mxu0
  %243 = vmatprep.mubr.f32.mxu0 0.0
  %244 = vmatmul.mubr.f32.gmra.mrb[0].mxu0 %v129
  %v245 = vpop.f32.mrb[0].mxu0
  %v246 = vadd.f32 %v73, %v245
  %v247 = vpop.f32.mrb[0].mxu0
  %248 = vmatprep.mubr.f32.mxu0 0.0
  %249 = vmatmul.mubr.f32.gmra.mrb[0].mxu0 %v132
  %v250 = vpop.f32.mrb[0].mxu0
  %v251 = vadd.f32 %v78, %v250
  %v252 = vpop.f32.mrb[0].mxu0
  %253 = vmatprep.mubr.f32.mxu0 0.0
  %254 = vmatmul.mubr.f32.gmra.mrb[0].mxu0 %v135
  %v255 = vpop.f32.mrb[0].mxu0
  %v256 = vadd.f32 %v83, %v255
  %v257 = vpop.f32.mrb[0].mxu0
  %258 = vmatprep.mubr.f32.mxu0 0.0
  %259 = vmatmul.mubr.f32.gmra.mrb[0].mxu0 %v138
  %v260 = vpop.f32.mrb[0].mxu0
  %v261 = vadd.f32 %v88, %v260
  %v262 = vpop.f32.mrb[0].mxu0
  %263 = vmatprep.mubr.f32.mxu0 0.0
  %264 = vmatmul.mubr.f32.gmra.mrb[0].mxu0 %v141
  %v265 = vpop.f32.mrb[0].mxu0
  %v266 = vadd.f32 %v93, %v265
  %v267 = vpop.f32.mrb[0].mxu0
  %268 = vmatprep.mubr.f32.mxu0 0.0
  %269 = vmatmul.mubr.f32.gmra.mrb[0].mxu0 %v144
  %v270 = vpop.f32.mrb[0].mxu0
  %v271 = vadd.f32 %v98, %v270
  %v272 = vpop.f32.mrb[0].mxu0
  %273 = vmatprep.mubr.f32.mxu0 0.0
  %274 = vmatmul.mubr.f32.gmra.mrb[0].mxu0 %v147
  %v275 = vpop.f32.mrb[0].mxu0
  %v276 = vadd.f32 %v103, %v275
  %v277 = vpop.f32.mrb[0].mxu0
  %278 = vmatprep.mubr.f32.mxu0 0.0
  %279 = vmatmul.mubr.f32.gmra.mrb[0].mxu0 %v150
  %v280 = vpop.f32.mrb[0].mxu0
  %v281 = vadd.f32 %v108, %v280
  %v282 = vpop.f32.mrb[0].mxu0
  %283 = vmatprep.mubr.f32.mxu0 0.0
  %284 = vmatmul.mubr.f32.gmra.mrb[0].mxu0 %v153
  %v285 = vpop.f32.mrb[0].mxu0
  %v286 = vadd.f32 %v113, %v285
  %v287 = vpop.f32.mrb[0].mxu0
  %288 = vdwg.mxu0
  %v289 = vmax.f32 %v226, 0.0
  %v290 = vmax.f32 %v231, 0.0
  %v291 = vmax.f32 %v236, 0.0
  %v292 = vmax.f32 %v241, 0.0
  %v293 = vmax.f32 %v246, 0.0
  %v294 = vmax.f32 %v251, 0.0
  %v295 = vmax.f32 %v256, 0.0
  %v296 = vmax.f32 %v261, 0.0
  %v297 = vmax.f32 %v266, 0.0
  %v298 = vmax.f32 %v271, 0.0
  %v299 = vmax.f32 %v276, 0.0
  %v300 = vmax.f32 %v281, 0.0
  %v301 = vmax.f32 %v286, 0.0
  %v302 = vld [vmem:[%s3] sm:$0xff]
  %v303 = vld [vmem:[%s3 + $0x8] sm:$0xff]
  %v304 = vld [vmem:[%s3 + $0x10] sm:$0xff]
  %v305 = vld [vmem:[%s3 + $0x18] sm:$0xff]
  %v306 = vld [vmem:[%s3 + $0x20] sm:$0xff]
  %v307 = vld [vmem:[%s3 + $0x28] sm:$0xff]
  %v308 = vld [vmem:[%s3 + $0x30] sm:$0xff]
  %v309 = vld [vmem:[%s3 + $0x38] sm:$0xff]
  %v310 = vld [vmem:[%s3 + $0x40] sm:$0xff]
  %v311 = vld [vmem:[%s3 + $0x48] sm:$0xff]
  %v312 = vld [vmem:[%s3 + $0x50] sm:$0xff]
  %v313 = vld [vmem:[%s3 + $0x58] sm:$0xff]
  %v314 = vld [vmem:[%s3 + $0x60] sm:$0xf]
  %316 = vset.pattern.permute.xlu0 0
  %317 = vperm.xlu0 %316, %v302
  %v318 = vpop.permute.xlu0 %317
  %321 = vset.pattern.permute.xlu0 0
  %322 = vperm.xlu0 %321, %v303
  %v323 = vpop.permute.xlu0 %322
  %326 = vset.pattern.permute.xlu0 0
  %327 = vperm.xlu0 %326, %v304
  %v328 = vpop.permute.xlu0 %327
  %331 = vset.pattern.permute.xlu0 0
  %332 = vperm.xlu0 %331, %v305
  %v333 = vpop.permute.xlu0 %332
  %336 = vset.pattern.permute.xlu0 0
  %337 = vperm.xlu0 %336, %v306
  %v338 = vpop.permute.xlu0 %337
  %341 = vset.pattern.permute.xlu0 0
  %342 = vperm.xlu0 %341, %v307
  %v343 = vpop.permute.xlu0 %342
  %346 = vset.pattern.permute.xlu0 0
  %347 = vperm.xlu0 %346, %v308
  %v348 = vpop.permute.xlu0 %347
  %351 = vset.pattern.permute.xlu0 0
  %352 = vperm.xlu0 %351, %v309
  %v353 = vpop.permute.xlu0 %352
  %356 = vset.pattern.permute.xlu0 0
  %357 = vperm.xlu0 %356, %v310
  %v358 = vpop.permute.xlu0 %357
  %361 = vset.pattern.permute.xlu0 0
  %362 = vperm.xlu0 %361, %v311
  %v363 = vpop.permute.xlu0 %362
  %366 = vset.pattern.permute.xlu0 0
  %367 = vperm.xlu0 %366, %v312
  %v368 = vpop.permute.xlu0 %367
  %371 = vset.pattern.permute.xlu0 0
  %372 = vperm.xlu0 %371, %v313
  %v373 = vpop.permute.xlu0 %372
  %376 = vset.pattern.permute.xlu0 0
  %377 = vperm.xlu0 %376, %v314
  %v378 = vpop.permute.xlu0 %377
  %v380 = vmul.f32 %v289, %v318
  %v381 = vmul.f32 %v290, %v323
  %v382 = vmul.f32 %v291, %v328
  %v383 = vmul.f32 %v292, %v333
  %v384 = vmul.f32 %v293, %v338
  %v385 = vmul.f32 %v294, %v343
  %v386 = vmul.f32 %v295, %v348
  %v387 = vmul.f32 %v296, %v353
  %v388 = vmul.f32 %v297, %v358
  %v389 = vmul.f32 %v298, %v363
  %v390 = vmul.f32 %v299, %v368
  %v391 = vmul.f32 %v300, %v373
  %v392 = vmul.f32 %v301, %v378
  %v393 = vadd.f32 %v380, %v381
  %v394 = vadd.f32 %v393, %v382
  %v395 = vadd.f32 %v394, %v383
  %v396 = vadd.f32 %v395, %v384
  %v397 = vadd.f32 %v396, %v385
  %v398 = vadd.f32 %v397, %v386
  %v399 = vadd.f32 %v398, %v387
  %v400 = vadd.f32 %v399, %v388
  %v401 = vadd.f32 %v400, %v389
  %v402 = vadd.f32 %v401, %v390
  %v403 = vadd.f32 %v402, %v391
  %vm404 = vcmask 1043456
  %v405 = vsel %vm404, %v392, 0.0
  %v406 = vadd.f32 %v403, %v405
  %v407 = vrot.slane %v406, 4
  %v408 = vadd.f32 %v406, %v407
  %v409 = vrot.slane %v408, 2
  %v410 = vadd.f32 %v408, %v409
  %v411 = vrot.slane %v410, 1
  %v412 = vadd.f32 %v410, %v411
  %v413 = vld [vmem:[#allocation2] sm:$0x1]
  %415 = vset.pattern.permute.xlu0 0
  %416 = vperm.xlu0 %415, %v413
  %v417 = vpop.permute.xlu0 %416
  %v419 = vlaneseq
  %v420 = vshrl.u32 %v419, 7
  %v421 = vsub.s32 0, %v420
  %v422 = vrot.slane %v417, %v421
  %v423 = vadd.f32 %v412, %v422
  %424 = vst [vmem:[%s5] sm:$0x1] %v423
  // Predicated region
  $region22: #{regression_nn_forward.1} parent=0 // pred_check
    _
  $region23: #{regression_nn_forward.1} parent=0 // pred_check_branch
    %426 = sbr.rel (0) target = $region25
  $region24: #{regression_nn_forward.1} parent=0 // pred_region
    _
  $region25: #{regression_nn_forward.1} parent=0 // pred_fallthru
    _
  // Predicated region
  $region26: #{regression_nn_forward.1} parent=0 // pred_check
    _
  $region27: #{regression_nn_forward.1} parent=0 // pred_check_branch
    %428 = sbr.rel (0) target = $region29
  $region28: #{regression_nn_forward.1} parent=0 // pred_region
    _
  $region29: #{regression_nn_forward.1} parent=0 // pred_fallthru
    _

</llo_original>
